<compile_context>
chip_gen: v5e
topology: v5e:2x2
jax: 0.10.0
libtpu: 0.0.40
codegen_flags: <defaults>
</compile_context>

<pallas_src>
import functools

import jax
import jax.numpy as jnp
from jax import lax
from jax.experimental import pallas as pl
from jax.experimental.pallas import tpu as pltpu


def _round_up(x, m):
    return ((x + m - 1) // m) * m


# ----------------------------------------------------------------------------------
# Kernel 1: fused matmul   out = relu?(x @ w + b [+ add]),  full-K blocks.
# ----------------------------------------------------------------------------------
def _mm_kernel(x_ref, w_ref, b_ref, o_ref, *, relu):
    r = jnp.dot(x_ref[...], w_ref[...],
                preferred_element_type=jnp.float32) + b_ref[...]
    if relu:
        r = jnp.maximum(r, 0.0)
    o_ref[...] = r.astype(o_ref.dtype)


def _mm_add_kernel(x_ref, w_ref, b_ref, add_ref, o_ref, *, relu):
    r = (jnp.dot(x_ref[...], w_ref[...], preferred_element_type=jnp.float32)
         + b_ref[...] + add_ref[...].astype(jnp.float32))
    if relu:
        r = jnp.maximum(r, 0.0)
    o_ref[...] = r.astype(o_ref.dtype)


def matmul_bias(x, w, b, add=None, relu=False, out_dtype=jnp.bfloat16, tm=1024):
    """out = relu?(x @ w + b [+ add]).   x:(M,K)  w:(K,N)  b:(1,N)  add:(M,N).

    K and N are kept whole (K <= ~2048, N <= 256 for every layer of this head);
    only M is tiled.  No activation padding: the ragged last M tile is handled by
    Pallas boundary blocks (padded reads / masked writes).  bf16 inputs, f32
    accumulation + epilogue.
    """
    M, K = x.shape
    Kw, N = w.shape
    assert K == Kw and b.shape == (1, N)

    x = x.astype(jnp.bfloat16)
    w = w.astype(jnp.bfloat16)
    b = b.astype(jnp.float32)

    tm_e = min(_round_up(tm, 16), _round_up(M, 16))   # bf16 wants 16-row multiples
    grid = (pl.cdiv(M, tm_e),)

    in_specs = [
        pl.BlockSpec((tm_e, K), lambda i: (i, 0)),
        pl.BlockSpec((K, N), lambda i: (0, 0)),
        pl.BlockSpec((1, N), lambda i: (0, 0)),
    ]
    args = [x, w, b]
    if add is None:
        kern = functools.partial(_mm_kernel, relu=relu)
    else:
        assert add.shape == (M, N)
        in_specs.append(pl.BlockSpec((tm_e, N), lambda i: (i, 0)))
        args.append(add)        # kept in its own dtype; cast to f32 in the epilogue
        kern = functools.partial(_mm_add_kernel, relu=relu)

    return pl.pallas_call(
        kern,
        out_shape=jax.ShapeDtypeStruct((M, N), out_dtype),
        grid=grid,
        in_specs=in_specs,
        out_specs=pl.BlockSpec((tm_e, N), lambda i: (i, 0)),
        compiler_params=pltpu.CompilerParams(
            dimension_semantics=("parallel",),
            vmem_limit_bytes=32 * 1024 * 1024),
    )(*args)


# ----------------------------------------------------------------------------------
# Kernel 2: 3x3 conv (stride 1, pad 1), flat-raster formulation.
#   The zero-padded activation is flattened to raster rows; the 9 taps become
#   constant row offsets {dy*wp2 + dx}.  The flat raster stays in HBM; each grid
#   step manually DMAs ONE (tile + halo) row slab into a double-buffered VMEM
#   scratch (prefetching the next slab) and performs 9 shifted static-slice MXU
#   matmuls accumulated in an SSA value (written once).
# ----------------------------------------------------------------------------------
def _conv3x3_kernel(xf_hbm, w_ref, b_ref, o_ref, slab, sem,
                    *, taps, tm, halo, relu):
    i = pl.program_id(0)
    nblk = pl.num_programs(0)

    def dma(blk, slot):
        return pltpu.make_async_copy(
            xf_hbm.at[pl.ds(blk * tm, tm + halo)], slab.at[slot], sem.at[slot])

    @pl.when(i == 0)
    def _prime():
        dma(0, 0).start()

    slot = i % 2

    @pl.when(i + 1 < nblk)
    def _prefetch():                      # overlap next slab DMA with this compute
        dma(i + 1, 1 - slot).start()

    dma(i, slot).wait()

    cur = slab.at[slot]                   # (tm + halo, Cin) bf16 view
    acc = jnp.dot(cur[taps[0]:taps[0] + tm, :], w_ref[0],
                  preferred_element_type=jnp.float32)
    for t in range(1, 9):                 # static unroll: 9 MXU matmuls, SSA acc
        acc = acc + jnp.dot(cur[taps[t]:taps[t] + tm, :], w_ref[t],
                            preferred_element_type=jnp.float32)
    acc = acc + b_ref[...]
    if relu:
        acc = jnp.maximum(acc, 0.0)
    o_ref[...] = acc.astype(o_ref.dtype)


def conv3x3(x_nhwc, w, b, relu=False, out_dtype=jnp.bfloat16, tm=512):
    """3x3 conv, stride 1, pad 1.  w: (9, Cin, Cout), tap index = dy*3 + dx."""
    n, h, wd, cin = x_nhwc.shape
    cout = w.shape[-1]
    assert w.shape == (9, cin, cout) and b.shape == (1, cout)

    # padded raster width rounded to a sublane multiple so dy tap offsets are aligned
    wp2 = _round_up(wd + 2, 8)
    halo = 2 * wp2 + 2

    rows_min = n * (h + 2) * wp2
    tm_e = min(_round_up(tm, 16), _round_up(rows_min, 16))

    # extra zero rows under each image so every DMA slab [i*tm_e, i*tm_e+tm_e+halo)
    # stays inside the flattened raster (single jnp.pad; no second tail pad).
    extra_h = max(0, -(-(tm_e + halo + wd) // wp2) - 3)
    hp = h + 2 + extra_h
    total = n * hp * wp2

    # TODO(synk): the spatial zero-pad still materializes one padded copy in HBM;
    # fully in-kernel border handling (per-row DMAs into a pre-zeroed slab) would
    # remove it.
    xp = jnp.pad(x_nhwc.astype(jnp.bfloat16),
                 ((0, 0), (1, 1 + extra_h), (1, wp2 - wd - 1), (0, 0)))
    xf = xp.reshape(total, cin)           # flattened padded raster rows (HBM)

    m_needed = (n - 1) * hp * wp2 + (h - 1) * wp2 + wd   # last valid output row + 1
    nblk = pl.cdiv(m_needed, tm_e)
    assert nblk * tm_e + halo <= total, "conv3x3 slab padding mis-sized"

    taps = tuple(dy * wp2 + dx for dy in range(3) for dx in range(3))
    kern = functools.partial(_conv3x3_kernel, taps=taps, tm=tm_e, halo=halo,
                             relu=relu)

    out = pl.pallas_call(
        kern,
        out_shape=jax.ShapeDtypeStruct((total, cout), out_dtype),
        grid=(nblk,),
        in_specs=[
            pl.BlockSpec(memory_space=pl.ANY),             # flat raster, manual DMA
            pl.BlockSpec((9, cin, cout), lambda i: (0, 0, 0)),
            pl.BlockSpec((1, cout), lambda i: (0, 0)),
        ],
        out_specs=pl.BlockSpec((tm_e, cout), lambda i: (i, 0)),
        scratch_shapes=[
            pltpu.VMEM((2, tm_e + halo, cin), jnp.bfloat16),   # double-buffered slab
            pltpu.SemaphoreType.DMA((2,)),
        ],
        compiler_params=pltpu.CompilerParams(
            dimension_semantics=("arbitrary",),            # cross-step DMA pipeline
            vmem_limit_bytes=32 * 1024 * 1024),
    )(xf, w.astype(jnp.bfloat16), b.astype(jnp.float32))

    # valid outputs live at padded-raster positions (y, x) with y < H, x < W
    return out.reshape(n, hp, wp2, cout)[:, :h, :wd, :]


# ----------------------------------------------------------------------------------
# Glue
# ----------------------------------------------------------------------------------
def upsample2x_nearest(x_nhwc):
    # TODO(synk): fuse this nearest-2x upsample into the lateral matmul (half-res
    # `add` BlockSpec + in-kernel repeat) to avoid the 4x HBM materialization; kept
    # in JAX because the interleaved sublane repeat has in-kernel lowering risk.
    # (Also assumes exact 2x; the reference FPN interpolates to the lateral size.)
    return jnp.repeat(jnp.repeat(x_nhwc, 2, axis=1), 2, axis=2)


def init_params(key, in_channels_list, fpn_channels, num_anchors):
    params = {"fpn_lateral": [], "fpn_output": []}
    k = key

    def nrm(k, shape, scale=0.05):
        return (scale * jax.random.normal(k, shape)).astype(jnp.float32)

    for cin in in_channels_list:
        k, k1, k2, k3, k4 = jax.random.split(k, 5)
        params["fpn_lateral"].append(
            (nrm(k1, (cin, fpn_channels)), nrm(k2, (1, fpn_channels))))
        params["fpn_output"].append(
            (nrm(k3, (9, fpn_channels, fpn_channels)), nrm(k4, (1, fpn_channels))))
    k, k1, k2 = jax.random.split(k, 3)
    params["rpn_conv"] = (nrm(k1, (9, fpn_channels, fpn_channels)),
                          nrm(k2, (1, fpn_channels)))
    k, k1, k2 = jax.random.split(k, 3)
    params["rpn_cls"] = (nrm(k1, (fpn_channels, num_anchors)),
                         nrm(k2, (1, num_anchors)))
    k, k1, k2 = jax.random.split(k, 3)
    params["rpn_bbox"] = (nrm(k1, (fpn_channels, 4 * num_anchors)),
                          nrm(k2, (1, 4 * num_anchors)))
    return params


def head_forward(images, features_nchw, targets, params, num_anchors):
    """Eval-mode forward of Head: FPN -> RPN head.
    Returns per-level (objectness NCHW, bbox_deltas NCHW)."""
    del images, targets  # only used by anchor generation / proposal selection

    # one NCHW -> NHWC boundary transpose per level; everything below is NHWC/flat
    feats = [jnp.transpose(f, (0, 2, 3, 1)) for f in features_nchw]
    shapes = [f.shape for f in feats]
    nlev = len(feats)

    # ---- FPN ----
    fpn_outs = [None] * nlev
    n, h, wd, c = shapes[-1]
    wl, bl = params["fpn_lateral"][-1]
    last_inner = matmul_bias(feats[-1].reshape(n * h * wd, c), wl, bl
                             ).reshape(n, h, wd, -1)
    wo, bo = params["fpn_output"][-1]
    fpn_outs[-1] = conv3x3(last_inner, wo, bo)

    for i in range(nlev - 2, -1, -1):          # top-down pathway
        n, h, wd, c = shapes[i]
        up = upsample2x_nearest(last_inner)
        wl, bl = params["fpn_lateral"][i]
        last_inner = matmul_bias(feats[i].reshape(n * h * wd, c), wl, bl,
                                 add=up.reshape(n * h * wd, -1)
                                 ).reshape(n, h, wd, -1)
        wo, bo = params["fpn_output"][i]
        fpn_outs[i] = conv3x3(last_inner, wo, bo)
    # TODO(synk): maskrcnn_benchmark FPN optionally appends LastLevelMaxPool (P6); omitted.

    # ---- RPN head ----
    A = num_anchors
    wcl, bcl = params["rpn_cls"]
    wbb, bbb = params["rpn_bbox"]
    n_head = 5 * A
    n_pad = _round_up(n_head, 128)             # lane-dense fused cls+bbox output
    w_head = jnp.pad(jnp.concatenate([wcl, wbb], axis=1),
                     ((0, 0), (0, n_pad - n_head)))
    b_head = jnp.pad(jnp.concatenate([bcl, bbb], axis=1),
                     ((0, 0), (0, n_pad - n_head)))

    wc, bc = params["rpn_conv"]
    proposals = []
    for p in fpn_outs:
        # TODO(synk): batching the shared 3x3 rpn_conv across levels (scalar-prefetched
        # per-level offsets) would feed both v7x TensorCores; kept per-level here.
        t = conv3x3(p, wc, bc, relu=True)
        n, h, wd, cc = t.shape
        # fused cls+bbox 1x1 conv per level (no cross-level activation concat)
        o = matmul_bias(t.reshape(n * h * wd, cc), w_head, b_head,
                        out_dtype=jnp.float32).reshape(n, h, wd, n_pad)
        logits = jnp.transpose(o[..., :A], (0, 3, 1, 2))       # NCHW at the boundary
        bbox = jnp.transpose(o[..., A:n_head], (0, 3, 1, 2))
        proposals.append((logits, bbox))
    # TODO(synk): anchor generation, box decoding, top-k and NMS (BoxList proposals)
    # have no clean Pallas equivalent; returning the dense RPN predictions.
    return proposals


# ----------------------------------------------------------------------------------
if __name__ == "__main__":
    key = jax.random.PRNGKey(0)
    kc = jax.random.split(key, 8)

    # ---- quick kernel correctness checks against pure-JAX references ----
    xmm = jax.random.normal(kc[0], (300, 200), jnp.float32)
    wmm = 0.1 * jax.random.normal(kc[1], (200, 16), jnp.float32)
    bmm = 0.1 * jax.random.normal(kc[2], (1, 16), jnp.float32)
    amm = jax.random.normal(kc[3], (300, 16), jnp.float32)
    got = matmul_bias(xmm, wmm, bmm, add=amm, relu=True,
                      out_dtype=jnp.float32, tm=128)   # multi-block + ragged tail
    ref = jnp.maximum(xmm @ wmm + bmm + amm, 0.0)
    assert jnp.allclose(got, ref, rtol=0.05, atol=0.05), "matmul_bias mismatch"

    xcv = jax.random.normal(kc[4], (2, 5, 7, 8), jnp.float32)
    wcv = 0.1 * jax.random.normal(kc[5], (9, 8, 8), jnp.float32)
    bcv = 0.1 * jax.random.normal(kc[6], (1, 8), jnp.float32)
    got = conv3x3(xcv, wcv, bcv, out_dtype=jnp.float32)
    ref = lax.conv_general_dilated(
        xcv, wcv.reshape(3, 3, 8, 8), window_strides=(1, 1), padding="SAME",
        dimension_numbers=("NHWC", "HWIO", "NHWC")) + bcv.reshape(1, 1, 1, -1)
    assert jnp.allclose(got, ref, rtol=0.05, atol=0.05), "conv3x3 mismatch"

    # ---- Head forward at toy shapes ----
    batch = 2
    in_channels_list = [4, 8, 16]        # C2, C3, C4
    spatial = [16, 8, 4]
    fpn_channels = 8
    num_anchors = 3

    kp, kf, ki = jax.random.split(kc[7], 3)
    params = init_params(kp, in_channels_list, fpn_channels, num_anchors)

    feat_keys = jax.random.split(kf, len(in_channels_list))
    features = [
        jax.random.normal(feat_keys[i],
                          (batch, in_channels_list[i], spatial[i], spatial[i]),
                          dtype=jnp.float32)
        for i in range(len(in_channels_list))
    ]
    images = jax.random.normal(ki, (batch, 3, 32, 32), dtype=jnp.float32)
    targets = None  # eval mode

    fwd = jax.jit(lambda imgs, fts: head_forward(imgs, fts, None, params,
                                                 num_anchors))
    proposals = fwd(images, features)
    for logits, bbox in proposals:
        jax.block_until_ready(logits)
        jax.block_until_ready(bbox)

    # shapes match the PyTorch RPN head conv outputs (NCHW)
    for (logits, bbox), s in zip(proposals, spatial):
        assert logits.shape == (batch, num_anchors, s, s)
        assert bbox.shape == (batch, 4 * num_anchors, s, s)

    print("KERNEL_OK")
</pallas_src>

<mosaic_0001>
module attributes {stable_mosaic.version = 11 : i64} {
  func.func @_mm_add_kernel(%arg0: i32, %arg1: memref<128x200xbf16, #tpu.memory_space<vmem>>, %arg2: memref<200x16xbf16, #tpu.memory_space<vmem>>, %arg3: memref<1x16xf32, #tpu.memory_space<vmem>>, %arg4: memref<128x16xf32, #tpu.memory_space<vmem>>, %arg5: memref<128x16xf32, #tpu.memory_space<vmem>>) attributes {dimension_semantics = [#tpu.dimension_semantics<parallel>], iteration_bounds = array<i64: 3>, scalar_prefetch = 0 : i64, scratch_operands = 0 : i64, tpu.core_type = #tpu.core_type<tc>, window_params = [{transform_indices = @transform_0, window_bounds = array<i64: 128, 200>}, {pipeline_mode = #tpu.pipeline_mode<synchronous>, transform_indices = @transform_1, window_bounds = array<i64: 200, 16>}, {pipeline_mode = #tpu.pipeline_mode<synchronous>, transform_indices = @transform_2, window_bounds = array<i64: 1, 16>}, {transform_indices = @transform_3, window_bounds = array<i64: 128, 16>}, {transform_indices = @transform_4, window_bounds = array<i64: 128, 16>}]} {
    %c0 = arith.constant 0 : index
    %c0_0 = arith.constant 0 : index
    %0 = vector.load %arg1[%c0, %c0_0] : memref<128x200xbf16, #tpu.memory_space<vmem>>, vector<128x200xbf16>
    %c0_1 = arith.constant 0 : index
    %c0_2 = arith.constant 0 : index
    %1 = vector.load %arg2[%c0_1, %c0_2] : memref<200x16xbf16, #tpu.memory_space<vmem>>, vector<200x16xbf16>
    %cst = arith.constant dense<0.000000e+00> : vector<128x16xf32>
    %2 = tpu.matmul %0, %1, %cst {dimension_numbers = #tpu.dot_dimension_numbers<[1], [0], [0], [1], [0, 0, 1, 1], [], []>} : vector<128x200xbf16>, vector<200x16xbf16>, vector<128x16xf32> -> vector<128x16xf32>
    %c0_3 = arith.constant 0 : index
    %c0_4 = arith.constant 0 : index
    %3 = vector.load %arg3[%c0_3, %c0_4] : memref<1x16xf32, #tpu.memory_space<vmem>>, vector<1x16xf32>
    %4 = vector.broadcast %3 : vector<1x16xf32> to vector<128x16xf32>
    %5 = arith.addf %2, %4 : vector<128x16xf32>
    %c0_5 = arith.constant 0 : index
    %c0_6 = arith.constant 0 : index
    %6 = vector.load %arg4[%c0_5, %c0_6] : memref<128x16xf32, #tpu.memory_space<vmem>>, vector<128x16xf32>
    %7 = arith.addf %5, %6 : vector<128x16xf32>
    %cst_7 = arith.constant 0.000000e+00 : f32
    %8 = vector.broadcast %cst_7 : f32 to vector<128x16xf32>
    %9 = arith.maximumf %7, %8 : vector<128x16xf32>
    %c0_8 = arith.constant 0 : index
    %c0_9 = arith.constant 0 : index
    %10 = vector.load %arg5[%c0_8, %c0_9] : memref<128x16xf32, #tpu.memory_space<vmem>>, vector<128x16xf32>
    tpu.vector_store %arg5[%c0_8, %c0_9], %9 {strides = array<i32>} : memref<128x16xf32, #tpu.memory_space<vmem>>, vector<128x16xf32>,
    return
  }
  func.func @transform_0(%arg0: i32) -> (i32, i32) {
    %c0_i32 = arith.constant 0 : i32
    %c0_i32_0 = arith.constant 0 : i32
    return %arg0, %c0_i32 : i32, i32
  }
  func.func @transform_1(%arg0: i32) -> (i32, i32) {
    %c0_i32 = arith.constant 0 : i32
    %c0_i32_0 = arith.constant 0 : i32
    %c0_i32_1 = arith.constant 0 : i32
    return %c0_i32, %c0_i32_0 : i32, i32
  }
  func.func @transform_2(%arg0: i32) -> (i32, i32) {
    %c0_i32 = arith.constant 0 : i32
    %c0_i32_0 = arith.constant 0 : i32
    %c0_i32_1 = arith.constant 0 : i32
    return %c0_i32, %c0_i32_0 : i32, i32
  }
  func.func @transform_3(%arg0: i32) -> (i32, i32) {
    %c0_i32 = arith.constant 0 : i32
    %c0_i32_0 = arith.constant 0 : i32
    return %arg0, %c0_i32 : i32, i32
  }
  func.func @transform_4(%arg0: i32) -> (i32, i32) {
    %c0_i32 = arith.constant 0 : i32
    %c0_i32_0 = arith.constant 0 : i32
    return %arg0, %c0_i32 : i32, i32
  }
}

</mosaic_0001>

<llo_original>
// kernel: tpu_custom_call.1
$region0: #{tpu_custom_call.1}
  #allocation0 [shape = 'u32[]', space=smem, size = 0x4, offset = 0x4, fixed_abs, tag = 'smem constant byte address 0x4 - core index']
  #allocation1 [shape = 'u32[72,128]{1,0:T(1,128)}', space=vmem, size = 0x9000, scoped, tag = 'internal scratch']
  %s0 = inlined_call_operand.vmem [shape: bf16[300,200], index: 0, kind: input, shape index: {}]
  %s1 = inlined_call_operand.vmem [shape: bf16[200,16], index: 1, kind: input, shape index: {}]
  %s2 = inlined_call_operand.vmem [shape: f32[1,16], index: 2, kind: input, shape index: {}]
  %s3 = inlined_call_operand.vmem [shape: f32[300,16], index: 3, kind: input, shape index: {}]
  %s4 = inlined_call_operand.vmem [shape: f32[300,16], index: 4, kind: output, shape index: {}]
  %s5 = sld [smem:[#allocation0]]
  $region97: #{tpu_custom_call.1} parent=0
    _
  %s7 = ssub.s32 1, %s5
  %s8 = scalar_select 0, %s7, %s5
  $region1: #{tpu_custom_call.1} parent=0
    #allocation2 [shape = 'u8[131072]{0}', space=vmem, size = 0x20000, scoped, tag = 'output window, operand 0']
    loop: start=0, step=1, limit=5
    $region2: #{tpu_custom_call.1} parent=1 // loop_pre_header
      _
    $region3: #{tpu_custom_call.1} parent=1 // loop_header
      %s10 = sphi 0, %s14
      %p11 = scmp.ge.s32.totalorder %s10, 5
      %s20 = sphi 0, %s22
      %s23 = sphi 0, %s20
      %s24 = sphi 0, %s23
      %s40 = sphi 0, %s24
      %s44 = sphi 0, %s44
      %s46 = sphi 0, %s44
      %s47 = sphi 0, %s46
      %s61 = sphi 0, %s47
      %s65 = sphi 0, %s65
      %s67 = sphi 0, %s65
      %s68 = sphi 0, %s67
      %s82 = sphi 0, %s68
      %s88 = sphi 0, %s90
      %s91 = sphi 0, %s88
      %s92 = sphi 0, %s91
      %s108 = sphi 0, %s92
      %s114 = sphi 0, %s116
      %s117 = sphi 0, %s114
      %s118 = sphi 0, %s117
      %s134 = sphi 0, %s118
    $region4: #{tpu_custom_call.1} parent=1 // loop_header_branch
      %13 = sbr.rel (%p11) target = $region8
    $region5: #{tpu_custom_call.1} parent=1 // loop_body
      %s15 = ssub.s32 %s10, 1
      %s16 = ssub.s32 %s10, 2
      %s17 = sadd.s32 %s10, 1
      %s18 = ssub.s32 %s10, %s17
      %p19 = scmp.eq.s32.totalorder %s18, 0
      %s21 = sadd.s32 %s20, 1
      %s22 = scalar_select %p19, %s20, %s21
      %p25 = pneg %p19
      %p26 = scmp.eq.s32.totalorder %s10, 2
      %p27 = por %p25, %p26
      %p28 = scmp.ne.s32.totalorder %s20, %s23
      %p29 = scmp.eq.s32.totalorder %s10, 0
      %p30 = por %p28, %p29
      %p31 = scmp.ne.s32.totalorder %s20, %s23
      %p32 = scmp.eq.s32.totalorder %s15, 2
      %p33 = por %p31, %p32
      %p34 = scmp.ne.s32.totalorder %s23, %s24
      %p35 = scmp.eq.s32.totalorder %s15, 0
      %p36 = por %p34, %p35
      %p37 = scmp.ne.s32.totalorder %s23, %s24
      %p38 = scmp.eq.s32.totalorder %s16, 2
      %p39 = por %p37, %p38
      %p41 = scmp.ne.s32.totalorder %s24, %s40
      %p42 = scmp.eq.s32.totalorder %s16, 0
      %p43 = por %p41, %p42
      %s45 = sadd.s32 %s44, 1
      %p48 = scmp.eq.s32.totalorder %s10, 2
      %p49 = scmp.ne.s32.totalorder %s44, %s46
      %p50 = scmp.eq.s32.totalorder %s10, 0
      %p51 = por %p49, %p50
      %p52 = scmp.ne.s32.totalorder %s44, %s46
      %p53 = scmp.eq.s32.totalorder %s15, 2
      %p54 = por %p52, %p53
      %p55 = scmp.ne.s32.totalorder %s46, %s47
      %p56 = scmp.eq.s32.totalorder %s15, 0
      %p57 = por %p55, %p56
      %p58 = scmp.ne.s32.totalorder %s46, %s47
      %p59 = scmp.eq.s32.totalorder %s16, 2
      %p60 = por %p58, %p59
      %p62 = scmp.ne.s32.totalorder %s47, %s61
      %p63 = scmp.eq.s32.totalorder %s16, 0
      %p64 = por %p62, %p63
      %s66 = sadd.s32 %s65, 1
      %p69 = scmp.eq.s32.totalorder %s10, 2
      %p70 = scmp.ne.s32.totalorder %s65, %s67
      %p71 = scmp.eq.s32.totalorder %s10, 0
      %p72 = por %p70, %p71
      %p73 = scmp.ne.s32.totalorder %s65, %s67
      %p74 = scmp.eq.s32.totalorder %s15, 2
      %p75 = por %p73, %p74
      %p76 = scmp.ne.s32.totalorder %s67, %s68
      %p77 = scmp.eq.s32.totalorder %s15, 0
      %p78 = por %p76, %p77
      %p79 = scmp.ne.s32.totalorder %s67, %s68
      %p80 = scmp.eq.s32.totalorder %s16, 2
      %p81 = por %p79, %p80
      %p83 = scmp.ne.s32.totalorder %s68, %s82
      %p84 = scmp.eq.s32.totalorder %s16, 0
      %p85 = por %p83, %p84
      %s86 = ssub.s32 %s10, %s17
      %p87 = scmp.eq.s32.totalorder %s86, 0
      %s89 = sadd.s32 %s88, 1
      %s90 = scalar_select %p87, %s88, %s89
      %p93 = pneg %p87
      %p94 = scmp.eq.s32.totalorder %s10, 2
      %p95 = por %p93, %p94
      %p96 = scmp.ne.s32.totalorder %s88, %s91
      %p97 = scmp.eq.s32.totalorder %s10, 0
      %p98 = por %p96, %p97
      %p99 = scmp.ne.s32.totalorder %s88, %s91
      %p100 = scmp.eq.s32.totalorder %s15, 2
      %p101 = por %p99, %p100
      %p102 = scmp.ne.s32.totalorder %s91, %s92
      %p103 = scmp.eq.s32.totalorder %s15, 0
      %p104 = por %p102, %p103
      %p105 = scmp.ne.s32.totalorder %s91, %s92
      %p106 = scmp.eq.s32.totalorder %s16, 2
      %p107 = por %p105, %p106
      %p109 = scmp.ne.s32.totalorder %s92, %s108
      %p110 = scmp.eq.s32.totalorder %s16, 0
      %p111 = por %p109, %p110
      %s112 = ssub.s32 %s10, %s17
      %p113 = scmp.eq.s32.totalorder %s112, 0
      %s115 = sadd.s32 %s114, 1
      %s116 = scalar_select %p113, %s114, %s115
      %p119 = pneg %p113
      %p120 = scmp.eq.s32.totalorder %s10, 2
      %p121 = por %p119, %p120
      %p122 = scmp.ne.s32.totalorder %s114, %s117
      %p123 = scmp.eq.s32.totalorder %s10, 0
      %p124 = por %p122, %p123
      %p125 = scmp.ne.s32.totalorder %s114, %s117
      %p126 = scmp.eq.s32.totalorder %s15, 2
      %p127 = por %p125, %p126
      %p128 = scmp.ne.s32.totalorder %s117, %s118
      %p129 = scmp.eq.s32.totalorder %s15, 0
      %p130 = por %p128, %p129
      %p131 = scmp.ne.s32.totalorder %s117, %s118
      %p132 = scmp.eq.s32.totalorder %s16, 2
      %p133 = por %p131, %p132
      %p135 = scmp.ne.s32.totalorder %s118, %s134
      %p136 = scmp.eq.s32.totalorder %s16, 0
      %p137 = por %p135, %p136
      %p138 = scmp.le.s32.totalorder 1, %s10
      %p139 = scmp.lt.s32.totalorder %s10, 4
      %p140 = pnand %p138, %p139
      %p141 = pneg %p140
      // Predicated region
      $region9: #{tpu_custom_call.1} parent=5 // pred_check
        _
      $region10: #{tpu_custom_call.1} parent=5 // pred_check_branch
        %143 = sbr.rel (%p140) target = $region12
      $region11: #{tpu_custom_call.1} parent=5 // pred_region
        %s144 = ssub.s32 %s10, 1
        // Predicated region
        $region13: #{tpu_custom_call.1} parent=11 // pred_check
          %p145 = pneg %p57
        $region14: #{tpu_custom_call.1} parent=11 // pred_check_branch
          %147 = sbr.rel (%p145) target = $region16
        $region15: #{tpu_custom_call.1} parent=11 // pred_region
          _
        $region16: #{tpu_custom_call.1} parent=11 // pred_fallthru
          _
        // Predicated region
        $region17: #{tpu_custom_call.1} parent=11 // pred_check
          %p148 = pneg %p78
        $region18: #{tpu_custom_call.1} parent=11 // pred_check_branch
          %150 = sbr.rel (%p148) target = $region20
        $region19: #{tpu_custom_call.1} parent=11 // pred_region
          _
        $region20: #{tpu_custom_call.1} parent=11 // pred_fallthru
          _
      $region12: #{tpu_custom_call.1} parent=5 // pred_fallthru
        _
      %p151 = scmp.lt.s32.totalorder %s10, 3
      // Predicated region
      $region21: #{tpu_custom_call.1} parent=5 // pred_check
        %p152 = pneg %p151
      $region22: #{tpu_custom_call.1} parent=5 // pred_check_branch
        %154 = sbr.rel (%p152) target = $region24
      $region23: #{tpu_custom_call.1} parent=5 // pred_region
        // Predicated region
        $region25: #{tpu_custom_call.1} parent=23 // pred_check
          %p155 = pneg %p30
        $region26: #{tpu_custom_call.1} parent=23 // pred_check_branch
          %157 = sbr.rel (%p155) target = $region28
        $region27: #{tpu_custom_call.1} parent=23 // pred_region
          %s158 = smul.u32 16, %s10
          %s159 = ssub.s32 38, %s158
          %p160 = scmp.lt.s32.totalorder %s159, 16
          %s161 = scalar_select %p160, %s159, 16
          %s162 = smul.u32 4, %s161
          %s163 = smul.u32 %s162, 2
          %p164 = scmp.lt.s32.totalorder %s158, 37
          %s165 = scalar_select %p164, %s158, 37
          %s166 = smul.addr %s165, 2
          %s167 = smul.addr %s166, 4
          %s168 = scalar_lea.vmem %s0, %s167
          %s169 = smul.u32 16, %s10
          %s170 = ssub.s32 38, %s169
          %p171 = scmp.lt.s32.totalorder %s170, 16
          %s172 = scalar_select %p171, %s170, 16
          %s173 = smul.u32 4, %s172
          %s174 = smul.u32 %s173, 2
        $region28: #{tpu_custom_call.1} parent=23 // pred_fallthru
          _
        // Predicated region
        $region29: #{tpu_custom_call.1} parent=23 // pred_check
          %p175 = pneg %p98
        $region30: #{tpu_custom_call.1} parent=23 // pred_check_branch
          %177 = sbr.rel (%p175) target = $region32
        $region31: #{tpu_custom_call.1} parent=23 // pred_region
          %s178 = smul.u32 16, %s10
          %s179 = ssub.s32 38, %s178
          %p180 = scmp.lt.s32.totalorder %s179, 16
          %s181 = scalar_select %p180, %s179, 16
          %s182 = smul.u32 8, %s181
          %p183 = scmp.lt.s32.totalorder %s178, 37
          %s184 = scalar_select %p183, %s178, 37
          %s185 = smul.addr %s184, 8
          %s186 = scalar_lea.vmem %s3, %s185
          %s187 = smul.u32 16, %s10
          %s188 = ssub.s32 38, %s187
          %p189 = scmp.lt.s32.totalorder %s188, 16
          %s190 = scalar_select %p189, %s188, 16
          %s191 = smul.u32 8, %s190
        $region32: #{tpu_custom_call.1} parent=23 // pred_fallthru
          _
      $region24: #{tpu_custom_call.1} parent=5 // pred_fallthru
        _
      %p192 = scmp.le.s32.totalorder 1, %s10
      %p193 = scmp.lt.s32.totalorder %s10, 4
      %p194 = pnand %p192, %p193
      %p195 = pneg %p194
      // Predicated region
      $region33: #{tpu_custom_call.1} parent=5 // pred_check
        _
      $region34: #{tpu_custom_call.1} parent=5 // pred_check_branch
        %197 = sbr.rel (%p194) target = $region36
      $region35: #{tpu_custom_call.1} parent=5 // pred_region
        %s198 = ssub.s32 %s10, 1
        %s199 = smul.u32 16, %s15
        %s200 = ssub.s32 38, %s199
        %p201 = scmp.lt.s32.totalorder %s200, 16
        %s202 = scalar_select %p201, %s200, 16
        %s203 = smul.u32 4, %s202
        %s204 = smul.u32 %s203, 2
        %p205 = scmp.lt.s32.totalorder %s199, 37
        %s206 = scalar_select %p205, %s199, 37
        %s207 = smul.addr %s206, 2
        %s208 = smul.addr %s207, 4
        %s209 = scalar_lea.vmem %s0, %s208
        %p210 = pneg %p36
        %p211 = pneg %p33
        %p212 = pneg %p57
        %p213 = pneg %p54
        %p214 = pneg %p78
        %p215 = pneg %p75
        %s216 = smul.u32 16, %s15
        %s217 = ssub.s32 38, %s216
        %p218 = scmp.lt.s32.totalorder %s217, 16
        %s219 = scalar_select %p218, %s217, 16
        %s220 = smul.u32 8, %s219
        %p221 = scmp.lt.s32.totalorder %s216, 37
        %s222 = scalar_select %p221, %s216, 37
        %s223 = smul.addr %s222, 8
        %s224 = scalar_lea.vmem %s3, %s223
        %p225 = pneg %p104
        %p226 = pneg %p101
        %p227 = pneg %p130
        %p228 = pneg %p127
        %s229 = sand.u32 %s117, 1
        %s230 = sand.u32 %s117, 1
        %s231 = smul.addr %s230, 128
        %s232 = scalar_lea.vmem [#allocation2], %s231
        %s233 = smul.u32 16, %s15
        %s234 = ssub.s32 38, %s233
        %p235 = scmp.lt.s32.totalorder %s234, 16
        %s236 = scalar_select %p235, %s234, 16
        %s237 = smul.u32 4, %s236
        %s238 = smul.u32 %s237, 2
        %p239 = scmp.lt.s32.totalorder %s233, 37
        %s240 = scalar_select %p239, %s233, 37
        %s241 = smul.addr %s240, 2
        %s242 = smul.addr %s241, 4
        %s243 = scalar_lea.vmem %s0, %s242
        %s244 = smul.u32 16, %s15
        %s245 = ssub.s32 38, %s244
        %p246 = scmp.lt.s32.totalorder %s245, 16
        %s247 = scalar_select %p246, %s245, 16
        %s248 = smul.u32 4, %s247
        %s249 = smul.u32 %s248, 2
        %s250 = smul.u32 16, %s15
        %s251 = ssub.s32 38, %s250
        %p252 = scmp.lt.s32.totalorder %s251, 16
        %s253 = scalar_select %p252, %s251, 16
        %s254 = smul.u32 8, %s253
        %p255 = scmp.lt.s32.totalorder %s250, 37
        %s256 = scalar_select %p255, %s250, 37
        %s257 = smul.addr %s256, 8
        %s258 = scalar_lea.vmem %s3, %s257
        %s259 = smul.u32 16, %s15
        %s260 = ssub.s32 38, %s259
        %p261 = scmp.lt.s32.totalorder %s260, 16
        %s262 = scalar_select %p261, %s260, 16
        %s263 = smul.u32 8, %s262
        %s264 = smul.u32 16, %s15
        %s265 = ssub.s32 38, %s264
        %p266 = scmp.lt.s32.totalorder %s265, 16
        %s267 = scalar_select %p266, %s265, 16
        %s268 = smul.u32 8, %s267
        %v270 = vld [vmem:[%s243] sm:$0xff]
        %v271 = vld [vmem:[%s243 + $0x8] sm:$0xff]
        %v272 = vld [vmem:[%s243 + $0x10] sm:$0xff]
        %v273 = vld [vmem:[%s243 + $0x18] sm:$0xff]
        %v274 = vld [vmem:[%s243 + $0x20] sm:$0xff]
        %v275 = vld [vmem:[%s243 + $0x28] sm:$0xff]
        %v276 = vld [vmem:[%s243 + $0x30] sm:$0xff]
        %v277 = vld [vmem:[%s243 + $0x38] sm:$0xff]
        %v278 = vld [vmem:[%s243 + $0x40] sm:$0xff]
        %v279 = vld [vmem:[%s243 + $0x48] sm:$0xff]
        %v280 = vld [vmem:[%s243 + $0x50] sm:$0xff]
        %v281 = vld [vmem:[%s243 + $0x58] sm:$0xff]
        %v282 = vld [vmem:[%s243 + $0x60] sm:$0xff]
        %v283 = vld [vmem:[%s243 + $0x68] sm:$0xff]
        %v284 = vld [vmem:[%s243 + $0x70] sm:$0xff]
        %v285 = vld [vmem:[%s243 + $0x78] sm:$0xff]
        %v286 = vld [vmem:[%s1] sm:$0xf]
        %v287 = vld [vmem:[%s1 + $0x4] sm:$0xf]
        %v288 = vld [vmem:[%s1 + $0x8] sm:$0xf]
        %v289 = vld [vmem:[%s1 + $0xc] sm:$0xf]
        %v290 = vld [vmem:[%s1 + $0x10] sm:$0xf]
        %v291 = vld [vmem:[%s1 + $0x14] sm:$0xf]
        %v292 = vld [vmem:[%s1 + $0x18] sm:$0xf]
        %v293 = vld [vmem:[%s1 + $0x1c] sm:$0xf]
        %v294 = vld [vmem:[%s1 + $0x20] sm:$0xf]
        %v295 = vld [vmem:[%s1 + $0x24] sm:$0xf]
        %v296 = vld [vmem:[%s1 + $0x28] sm:$0xf]
        %v297 = vld [vmem:[%s1 + $0x2c] sm:$0xf]
        %v298 = vld [vmem:[%s1 + $0x30] sm:$0xf]
        %v299 = vld [vmem:[%s1 + $0x34] sm:$0xf]
        %v300 = vld [vmem:[%s1 + $0x38] sm:$0xf]
        %v301 = vld [vmem:[%s1 + $0x3c] sm:$0xf]
        %v302 = vld [vmem:[%s1 + $0x40] sm:$0xf]
        %v303 = vld [vmem:[%s1 + $0x44] sm:$0xf]
        %v304 = vld [vmem:[%s1 + $0x48] sm:$0xf]
        %v305 = vld [vmem:[%s1 + $0x4c] sm:$0xf]
        %v306 = vld [vmem:[%s1 + $0x50] sm:$0xf]
        %v307 = vld [vmem:[%s1 + $0x54] sm:$0xf]
        %v308 = vld [vmem:[%s1 + $0x58] sm:$0xf]
        %v309 = vld [vmem:[%s1 + $0x5c] sm:$0xf]
        %v310 = vld [vmem:[%s1 + $0x60] sm:$0xf]
        %v311 = vld [vmem:[%s2] sm:$0x1]
        %v313 = vperm.slane %v311, 0
        %v331 = vunpack.c.l.b16 %v270
        %v332 = vunpack.c.h.b16 %v270
        %v333 = vunpack.c.l.b16 %v271
        %v334 = vunpack.c.h.b16 %v271
        %v335 = vunpack.c.l.b16 %v272
        %v336 = vunpack.c.h.b16 %v272
        %v337 = vunpack.c.l.b16 %v273
        %v338 = vunpack.c.h.b16 %v273
        %v339 = vunpack.c.l.b16 %v274
        %v340 = vunpack.c.h.b16 %v274
        %v341 = vunpack.c.l.b16 %v275
        %v342 = vunpack.c.h.b16 %v275
        %v343 = vunpack.c.l.b16 %v276
        %v344 = vunpack.c.h.b16 %v276
        %v345 = vunpack.c.l.b16 %v277
        %v346 = vunpack.c.h.b16 %v277
        %v347 = vunpack.c.l.b16 %v278
        %v348 = vunpack.c.h.b16 %v278
        %v349 = vunpack.c.l.b16 %v279
        %v350 = vunpack.c.h.b16 %v279
        %v351 = vunpack.c.l.b16 %v280
        %v352 = vunpack.c.h.b16 %v280
        %v353 = vunpack.c.l.b16 %v281
        %v354 = vunpack.c.h.b16 %v281
        %v355 = vunpack.c.l.b16 %v282
        %v356 = vunpack.c.h.b16 %v282
        %v357 = vunpack.c.l.b16 %v283
        %v358 = vunpack.c.h.b16 %v283
        %v359 = vunpack.c.l.b16 %v284
        %v360 = vunpack.c.h.b16 %v284
        %v361 = vunpack.c.l.b16 %v285
        %v362 = vunpack.c.h.b16 %v285
        %v363 = vpack.c.b16 %v333, %v331
        %v364 = vpack.c.b16 %v334, %v332
        %v365 = vpack.c.b16 %v337, %v335
        %v366 = vpack.c.b16 %v338, %v336
        %v367 = vpack.c.b16 %v341, %v339
        %v368 = vpack.c.b16 %v342, %v340
        %v369 = vpack.c.b16 %v345, %v343
        %v370 = vpack.c.b16 %v346, %v344
        %v371 = vpack.c.b16 %v349, %v347
        %v372 = vpack.c.b16 %v350, %v348
        %v373 = vpack.c.b16 %v353, %v351
        %v374 = vpack.c.b16 %v354, %v352
        %v375 = vpack.c.b16 %v357, %v355
        %v376 = vpack.c.b16 %v358, %v356
        %v377 = vpack.c.b16 %v361, %v359
        %v378 = vpack.c.b16 %v362, %v360
        %v412 = vunpack.c.l.b16 %v286
        %v413 = vunpack.c.l.b16 %v287
        %v414 = vunpack.c.l.b16 %v288
        %v415 = vunpack.c.l.b16 %v289
        %v416 = vunpack.c.l.b16 %v290
        %v417 = vunpack.c.l.b16 %v291
        %v418 = vunpack.c.l.b16 %v292
        %v419 = vunpack.c.l.b16 %v293
        %v420 = vunpack.c.l.b16 %v294
        %v421 = vunpack.c.l.b16 %v295
        %v422 = vunpack.c.l.b16 %v296
        %v423 = vunpack.c.l.b16 %v297
        %v424 = vunpack.c.l.b16 %v298
        %v425 = vunpack.c.l.b16 %v299
        %v426 = vunpack.c.l.b16 %v300
        %v427 = vunpack.c.l.b16 %v301
        %v428 = vunpack.c.l.b16 %v302
        %v429 = vunpack.c.l.b16 %v303
        %v430 = vunpack.c.l.b16 %v304
        %v431 = vunpack.c.l.b16 %v305
        %v432 = vunpack.c.l.b16 %v306
        %v433 = vunpack.c.l.b16 %v307
        %v434 = vunpack.c.l.b16 %v308
        %v435 = vunpack.c.l.b16 %v309
        %v436 = vunpack.c.l.b16 %v310
        %v437 = vpack.c.b16 %v413, %v412
        %v438 = vpack.c.b16 %v415, %v414
        %v439 = vpack.c.b16 %v417, %v416
        %v440 = vpack.c.b16 %v419, %v418
        %v441 = vpack.c.b16 %v421, %v420
        %v442 = vpack.c.b16 %v423, %v422
        %v443 = vpack.c.b16 %v425, %v424
        %v444 = vpack.c.b16 %v427, %v426
        %v445 = vpack.c.b16 %v429, %v428
        %v446 = vpack.c.b16 %v431, %v430
        %v447 = vpack.c.b16 %v433, %v432
        %v448 = vpack.c.b16 %v435, %v434
        %v449 = vpack.c.b16 %v436, %v436
        %vm462 = vcmask 588800
        %v464 = vsel %vm462, %v364, 0
        %v467 = vsel %vm462, %v366, 0
        %v470 = vsel %vm462, %v368, 0
        %v473 = vsel %vm462, %v370, 0
        %v476 = vsel %vm462, %v372, 0
        %v479 = vsel %vm462, %v374, 0
        %v482 = vsel %vm462, %v376, 0
        %v485 = vsel %vm462, %v378, 0
        %vm487 = vcmask 1043456
        %v489 = vsel %vm487, %v449, 0
        %491 = vmatpush.bf16.msra.mxu0 %v444
        %492 = vmatpush.bf16.msra.mxu0 %v443
        %493 = vmatpush.bf16.msra.mxu0 %v442
        %494 = vmatpush.bf16.msra.mxu0 %v441
        %495 = vmatpush.bf16.msra.mxu0 %v440
        %496 = vmatpush.bf16.msra.mxu0 %v439
        %497 = vmatpush.bf16.msra.mxu0 %v438
        %498 = vmatpush.bf16.msra.mxu0 %v437
        %499 = vmatmul.bf16.gmra.mxu0 %v363
        %v500 = vpop.f32.mrf.mxu0
        %v501 = vadd.f32 %v313, %v500
        %v502 = vpop.f32.mrf.mxu0
        %v503 = vadd.f32 %v313, %v502
        %504 = vmatmul.bf16.gmra.mxu0 %v365
        %v505 = vpop.f32.mrf.mxu0
        %v506 = vadd.f32 %v313, %v505
        %v507 = vpop.f32.mrf.mxu0
        %v508 = vadd.f32 %v313, %v507
        %509 = vmatmul.bf16.gmra.mxu0 %v367
        %v510 = vpop.f32.mrf.mxu0
        %v511 = vadd.f32 %v313, %v510
        %v512 = vpop.f32.mrf.mxu0
        %v513 = vadd.f32 %v313, %v512
        %514 = vmatmul.bf16.gmra.mxu0 %v369
        %v515 = vpop.f32.mrf.mxu0
        %v516 = vadd.f32 %v313, %v515
        %v517 = vpop.f32.mrf.mxu0
        %v518 = vadd.f32 %v313, %v517
        %519 = vmatmul.bf16.gmra.mxu0 %v371
        %v520 = vpop.f32.mrf.mxu0
        %v521 = vadd.f32 %v313, %v520
        %v522 = vpop.f32.mrf.mxu0
        %v523 = vadd.f32 %v313, %v522
        %524 = vmatmul.bf16.gmra.mxu0 %v373
        %v525 = vpop.f32.mrf.mxu0
        %v526 = vadd.f32 %v313, %v525
        %v527 = vpop.f32.mrf.mxu0
        %v528 = vadd.f32 %v313, %v527
        %529 = vmatmul.bf16.gmra.mxu0 %v375
        %v530 = vpop.f32.mrf.mxu0
        %v531 = vadd.f32 %v313, %v530
        %v532 = vpop.f32.mrf.mxu0
        %v533 = vadd.f32 %v313, %v532
        %534 = vmatmul.bf16.gmra.mxu0 %v377
        %v535 = vpop.f32.mrf.mxu0
        %v536 = vadd.f32 %v313, %v535
        %v537 = vpop.f32.mrf.mxu0
        %v538 = vadd.f32 %v313, %v537
        %539 = vdwg.mxu0
        %540 = vmatpush.bf16.msra.mxu0 0
        %541 = vmatpush.bf16.msra.mxu0 0
        %542 = vmatpush.bf16.msra.mxu0 0
        %543 = vmatpush.bf16.msra.mxu0 %v489
        %544 = vmatpush.bf16.msra.mxu0 %v448
        %545 = vmatpush.bf16.msra.mxu0 %v447
        %546 = vmatpush.bf16.msra.mxu0 %v446
        %547 = vmatpush.bf16.msra.mxu0 %v445
        %548 = vmatmul.bf16.gmra.mxu0 %v464
        %v549 = vpop.f32.mrf.mxu0
        %v550 = vadd.f32 %v501, %v549
        %v551 = vpop.f32.mrf.mxu0
        %v552 = vadd.f32 %v503, %v551
        %553 = vmatmul.bf16.gmra.mxu0 %v467
        %v554 = vpop.f32.mrf.mxu0
        %v555 = vadd.f32 %v506, %v554
        %v556 = vpop.f32.mrf.mxu0
        %v557 = vadd.f32 %v508, %v556
        %558 = vmatmul.bf16.gmra.mxu0 %v470
        %v559 = vpop.f32.mrf.mxu0
        %v560 = vadd.f32 %v511, %v559
        %v561 = vpop.f32.mrf.mxu0
        %v562 = vadd.f32 %v513, %v561
        %563 = vmatmul.bf16.gmra.mxu0 %v473
        %v564 = vpop.f32.mrf.mxu0
        %v565 = vadd.f32 %v516, %v564
        %v566 = vpop.f32.mrf.mxu0
        %v567 = vadd.f32 %v518, %v566
        %568 = vmatmul.bf16.gmra.mxu0 %v476
        %v569 = vpop.f32.mrf.mxu0
        %v570 = vadd.f32 %v521, %v569
        %v571 = vpop.f32.mrf.mxu0
        %v572 = vadd.f32 %v523, %v571
        %573 = vmatmul.bf16.gmra.mxu0 %v479
        %v574 = vpop.f32.mrf.mxu0
        %v575 = vadd.f32 %v526, %v574
        %v576 = vpop.f32.mrf.mxu0
        %v577 = vadd.f32 %v528, %v576
        %578 = vmatmul.bf16.gmra.mxu0 %v482
        %v579 = vpop.f32.mrf.mxu0
        %v580 = vadd.f32 %v531, %v579
        %v581 = vpop.f32.mrf.mxu0
        %v582 = vadd.f32 %v533, %v581
        %583 = vmatmul.bf16.gmra.mxu0 %v485
        %v584 = vpop.f32.mrf.mxu0
        %v585 = vadd.f32 %v536, %v584
        %v586 = vpop.f32.mrf.mxu0
        %v587 = vadd.f32 %v538, %v586
        %588 = vdwg.mxu0
        %v589 = vld [vmem:[%s258] sm:$0xff]
        %v590 = vld [vmem:[%s258 + $0x8] sm:$0xff]
        %v591 = vld [vmem:[%s258 + $0x10] sm:$0xff]
        %v592 = vld [vmem:[%s258 + $0x18] sm:$0xff]
        %v593 = vld [vmem:[%s258 + $0x20] sm:$0xff]
        %v594 = vld [vmem:[%s258 + $0x28] sm:$0xff]
        %v595 = vld [vmem:[%s258 + $0x30] sm:$0xff]
        %v596 = vld [vmem:[%s258 + $0x38] sm:$0xff]
        %v597 = vld [vmem:[%s258 + $0x40] sm:$0xff]
        %v598 = vld [vmem:[%s258 + $0x48] sm:$0xff]
        %v599 = vld [vmem:[%s258 + $0x50] sm:$0xff]
        %v600 = vld [vmem:[%s258 + $0x58] sm:$0xff]
        %v601 = vld [vmem:[%s258 + $0x60] sm:$0xff]
        %v602 = vld [vmem:[%s258 + $0x68] sm:$0xff]
        %v603 = vld [vmem:[%s258 + $0x70] sm:$0xff]
        %v604 = vld [vmem:[%s258 + $0x78] sm:$0xff]
        %v605 = vadd.f32 %v550, %v589
        %v606 = vadd.f32 %v552, %v590
        %v607 = vadd.f32 %v555, %v591
        %v608 = vadd.f32 %v557, %v592
        %v609 = vadd.f32 %v560, %v593
        %v610 = vadd.f32 %v562, %v594
        %v611 = vadd.f32 %v565, %v595
        %v612 = vadd.f32 %v567, %v596
        %v613 = vadd.f32 %v570, %v597
        %v614 = vadd.f32 %v572, %v598
        %v615 = vadd.f32 %v575, %v599
        %v616 = vadd.f32 %v577, %v600
        %v617 = vadd.f32 %v580, %v601
        %v618 = vadd.f32 %v582, %v602
        %v619 = vadd.f32 %v585, %v603
        %v620 = vadd.f32 %v587, %v604
        %v621 = vmax.f32 %v605, 0.0
        %v622 = vmax.f32 %v606, 0.0
        %v623 = vmax.f32 %v607, 0.0
        %v624 = vmax.f32 %v608, 0.0
        %v625 = vmax.f32 %v609, 0.0
        %v626 = vmax.f32 %v610, 0.0
        %v627 = vmax.f32 %v611, 0.0
        %v628 = vmax.f32 %v612, 0.0
        %v629 = vmax.f32 %v613, 0.0
        %v630 = vmax.f32 %v614, 0.0
        %v631 = vmax.f32 %v615, 0.0
        %v632 = vmax.f32 %v616, 0.0
        %v633 = vmax.f32 %v617, 0.0
        %v634 = vmax.f32 %v618, 0.0
        %v635 = vmax.f32 %v619, 0.0
        %v636 = vmax.f32 %v620, 0.0
        %vm637 = vcmask 130048
        %638 = vst.msk [vmem:[%s232] sm:$0xff] %vm637, %v621
        %639 = vst.msk [vmem:[%s232 + $0x8] sm:$0xff] %vm637, %v622
        %640 = vst.msk [vmem:[%s232 + $0x10] sm:$0xff] %vm637, %v623
        %641 = vst.msk [vmem:[%s232 + $0x18] sm:$0xff] %vm637, %v624
        %642 = vst.msk [vmem:[%s232 + $0x20] sm:$0xff] %vm637, %v625
        %643 = vst.msk [vmem:[%s232 + $0x28] sm:$0xff] %vm637, %v626
        %644 = vst.msk [vmem:[%s232 + $0x30] sm:$0xff] %vm637, %v627
        %645 = vst.msk [vmem:[%s232 + $0x38] sm:$0xff] %vm637, %v628
        %646 = vst.msk [vmem:[%s232 + $0x40] sm:$0xff] %vm637, %v629
        %647 = vst.msk [vmem:[%s232 + $0x48] sm:$0xff] %vm637, %v630
        %648 = vst.msk [vmem:[%s232 + $0x50] sm:$0xff] %vm637, %v631
        %649 = vst.msk [vmem:[%s232 + $0x58] sm:$0xff] %vm637, %v632
        %650 = vst.msk [vmem:[%s232 + $0x60] sm:$0xff] %vm637, %v633
        %651 = vst.msk [vmem:[%s232 + $0x68] sm:$0xff] %vm637, %v634
        %652 = vst.msk [vmem:[%s232 + $0x70] sm:$0xff] %vm637, %v635
        %653 = vst.msk [vmem:[%s232 + $0x78] sm:$0xff] %vm637, %v636
        %s654 = sand.u32 %s117, 1
        %s655 = sand.u32 %s117, 1
        %s656 = smul.addr %s655, 128
        %s657 = scalar_lea.vmem [#allocation2], %s656
        // Predicated region
        $region37: #{tpu_custom_call.1} parent=35 // pred_check
          %p658 = pneg %p127
        $region38: #{tpu_custom_call.1} parent=35 // pred_check_branch
          %660 = sbr.rel (%p658) target = $region40
        $region39: #{tpu_custom_call.1} parent=35 // pred_region
          %s661 = smul.u32 16, %s15
          %s662 = ssub.s32 38, %s661
          %p663 = scmp.lt.s32.totalorder %s662, 16
          %s664 = scalar_select %p663, %s662, 16
          %s665 = smul.u32 8, %s664
          %p666 = scmp.ne.s32.totalorder 0, %s665
          %s667 = smul.addr %s661, 8
          %s668 = scalar_lea.vmem %s4, %s667
          // Predicated region
          $region41: #{tpu_custom_call.1} parent=39 // pred_check
            %p669 = pneg %p666
          $region42: #{tpu_custom_call.1} parent=39 // pred_check_branch
            %671 = sbr.rel (%p669) target = $region44
          $region43: #{tpu_custom_call.1} parent=39 // pred_region
            // Predicated region
            $region45: #{tpu_custom_call.1} parent=43 // pred_check
              _
            $region46: #{tpu_custom_call.1} parent=43 // pred_check_branch
              %673 = sbr.rel (0) target = $region48
            $region47: #{tpu_custom_call.1} parent=43 // pred_region
              // Predicated region
              $region67: #{tpu_custom_call.1} parent=47 // pred_check
                _
              $region68: #{tpu_custom_call.1} parent=47 // pred_check_branch
                %753 = sbr.rel (0) target = $region70
              $region69: #{tpu_custom_call.1} parent=47 // pred_region
                %s754 = sshrl.u32 %s664, 4
                // While loop
                $region71: #{tpu_custom_call.1} parent=69 // loop_pre_header
                  _
                $region72: #{tpu_custom_call.1} parent=69 // loop_header
                  %s756 = sphi 0, %s758
                  %p757 = scmp.ge.s32.totalorder %s756, %s754
                  %s761 = sphi 0, %s798
                  %s762 = sphi %s657, %s801
                  %s763 = sphi %s668, %s802
                $region73: #{tpu_custom_call.1} parent=69 // loop_header_branch
                  %760 = sbr.rel (%p757) target = $region77
                $region74: #{tpu_custom_call.1} parent=69 // loop_body
                  %v764 = vld [vmem:[%s762] sm:$0xff]
                  %765 = vst [vmem:[%s763] sm:$0xff] %v764
                  %v766 = vld [vmem:[%s762 + $0x8] sm:$0xff]
                  %767 = vst [vmem:[%s763 + $0x8] sm:$0xff] %v766
                  %v768 = vld [vmem:[%s762 + $0x10] sm:$0xff]
                  %769 = vst [vmem:[%s763 + $0x10] sm:$0xff] %v768
                  %v770 = vld [vmem:[%s762 + $0x18] sm:$0xff]
                  %771 = vst [vmem:[%s763 + $0x18] sm:$0xff] %v770
                  %v772 = vld [vmem:[%s762 + $0x20] sm:$0xff]
                  %773 = vst [vmem:[%s763 + $0x20] sm:$0xff] %v772
                  %v774 = vld [vmem:[%s762 + $0x28] sm:$0xff]
                  %775 = vst [vmem:[%s763 + $0x28] sm:$0xff] %v774
                  %v776 = vld [vmem:[%s762 + $0x30] sm:$0xff]
                  %777 = vst [vmem:[%s763 + $0x30] sm:$0xff] %v776
                  %v778 = vld [vmem:[%s762 + $0x38] sm:$0xff]
                  %779 = vst [vmem:[%s763 + $0x38] sm:$0xff] %v778
                  %v780 = vld [vmem:[%s762 + $0x40] sm:$0xff]
                  %781 = vst [vmem:[%s763 + $0x40] sm:$0xff] %v780
                  %v782 = vld [vmem:[%s762 + $0x48] sm:$0xff]
                  %783 = vst [vmem:[%s763 + $0x48] sm:$0xff] %v782
                  %v784 = vld [vmem:[%s762 + $0x50] sm:$0xff]
                  %785 = vst [vmem:[%s763 + $0x50] sm:$0xff] %v784
                  %v786 = vld [vmem:[%s762 + $0x58] sm:$0xff]
                  %787 = vst [vmem:[%s763 + $0x58] sm:$0xff] %v786
                  %v788 = vld [vmem:[%s762 + $0x60] sm:$0xff]
                  %789 = vst [vmem:[%s763 + $0x60] sm:$0xff] %v788
                  %v790 = vld [vmem:[%s762 + $0x68] sm:$0xff]
                  %791 = vst [vmem:[%s763 + $0x68] sm:$0xff] %v790
                  %v792 = vld [vmem:[%s762 + $0x70] sm:$0xff]
                  %793 = vst [vmem:[%s763 + $0x70] sm:$0xff] %v792
                  %v794 = vld [vmem:[%s762 + $0x78] sm:$0xff]
                  %795 = vst [vmem:[%s763 + $0x78] sm:$0xff] %v794
                  %s796 = sadd.s32 1, %s761
                  %p797 = scmp.ge.s32.totalorder %s796, %s754
                  %s798 = scalar_select %p797, 0, %s796
                  %s799 = smul.u32 %s798, 128
                  %s800 = smul.u32 %s798, 128
                  %s801 = scalar_lea.vmem %s657, %s799 [#allocation2]
                  %s802 = scalar_lea.vmem %s668, %s800
                $region75: #{tpu_custom_call.1} parent=69 // loop_footer
                  %s758 = sadd.s32 %s756, 1
                $region76: #{tpu_custom_call.1} parent=69 // loop_footer_branch
                  %755 = sbr.rel target = $region72
                $region77: #{tpu_custom_call.1} parent=69 // loop_exit
                  _
                %s803 = sshrl.u32 %s664, 4
                %s804 = sand.u32 %s664, 15
                %s805 = smul.u32 %s803, 16
                %s806 = smul.u32 8, %s805
                %s807 = scalar_lea.vmem %s657, %s806 [#allocation2]
                %s808 = smul.u32 8, %s805
                %s809 = scalar_lea.vmem %s668, %s808
                // While loop
                $region78: #{tpu_custom_call.1} parent=69 // loop_pre_header
                  _
                $region79: #{tpu_custom_call.1} parent=69 // loop_header
                  %s811 = sphi 0, %s813
                  %p812 = scmp.ge.s32.totalorder %s811, %s804
                  %s816 = sphi 0, %s823
                  %s817 = sphi %s807, %s826
                  %s818 = sphi %s809, %s827
                $region80: #{tpu_custom_call.1} parent=69 // loop_header_branch
                  %815 = sbr.rel (%p812) target = $region84
                $region81: #{tpu_custom_call.1} parent=69 // loop_body
                  %v819 = vld [vmem:[%s817] sm:$0xff]
                  %820 = vst [vmem:[%s818] sm:$0xff] %v819
                  %s821 = sadd.s32 1, %s816
                  %p822 = scmp.ge.s32.totalorder %s821, %s804
                  %s823 = scalar_select %p822, 0, %s821
                  %s824 = smul.u32 %s823, 8
                  %s825 = smul.u32 %s823, 8
                  %s826 = scalar_lea.vmem %s807, %s824 [#allocation2]
                  %s827 = scalar_lea.vmem %s809, %s825
                $region82: #{tpu_custom_call.1} parent=69 // loop_footer
                  %s813 = sadd.s32 %s811, 1
                $region83: #{tpu_custom_call.1} parent=69 // loop_footer_branch
                  %810 = sbr.rel target = $region79
                $region84: #{tpu_custom_call.1} parent=69 // loop_exit
                  _
              $region70: #{tpu_custom_call.1} parent=47 // pred_fallthru
                _
              // Predicated region
              $region85: #{tpu_custom_call.1} parent=47 // pred_check
                _
              $region86: #{tpu_custom_call.1} parent=47 // pred_check_branch
                %829 = sbr.rel target = $region88
              $region87: #{tpu_custom_call.1} parent=47 // pred_region
                _
              $region88: #{tpu_custom_call.1} parent=47 // pred_fallthru
                _
            $region48: #{tpu_custom_call.1} parent=43 // pred_fallthru
              _
            // Predicated region
            $region49: #{tpu_custom_call.1} parent=43 // pred_check
              _
            $region50: #{tpu_custom_call.1} parent=43 // pred_check_branch
              %675 = sbr.rel target = $region52
            $region51: #{tpu_custom_call.1} parent=43 // pred_region
              %s677 = ssub.s32 256, 1
              %s678 = sshrl.u32 %s664, 4
              // While loop
              $region53: #{tpu_custom_call.1} parent=51 // loop_pre_header
                _
              $region54: #{tpu_custom_call.1} parent=51 // loop_header
                %s680 = sphi 0, %s682
                %p681 = scmp.ge.s32.totalorder %s680, %s678
                %s685 = sphi 0, %s722
                %s686 = sphi %s657, %s725
                %s687 = sphi %s668, %s726
              $region55: #{tpu_custom_call.1} parent=51 // loop_header_branch
                %684 = sbr.rel (%p681) target = $region59
              $region56: #{tpu_custom_call.1} parent=51 // loop_body
                %v688 = vld [vmem:[%s686] sm:%s677]
                %689 = vst [vmem:[%s687] sm:%s677] %v688
                %v690 = vld [vmem:[%s686 + $0x8] sm:%s677]
                %691 = vst [vmem:[%s687 + $0x8] sm:%s677] %v690
                %v692 = vld [vmem:[%s686 + $0x10] sm:%s677]
                %693 = vst [vmem:[%s687 + $0x10] sm:%s677] %v692
                %v694 = vld [vmem:[%s686 + $0x18] sm:%s677]
                %695 = vst [vmem:[%s687 + $0x18] sm:%s677] %v694
                %v696 = vld [vmem:[%s686 + $0x20] sm:%s677]
                %697 = vst [vmem:[%s687 + $0x20] sm:%s677] %v696
                %v698 = vld [vmem:[%s686 + $0x28] sm:%s677]
                %699 = vst [vmem:[%s687 + $0x28] sm:%s677] %v698
                %v700 = vld [vmem:[%s686 + $0x30] sm:%s677]
                %701 = vst [vmem:[%s687 + $0x30] sm:%s677] %v700
                %v702 = vld [vmem:[%s686 + $0x38] sm:%s677]
                %703 = vst [vmem:[%s687 + $0x38] sm:%s677] %v702
                %v704 = vld [vmem:[%s686 + $0x40] sm:%s677]
                %705 = vst [vmem:[%s687 + $0x40] sm:%s677] %v704
                %v706 = vld [vmem:[%s686 + $0x48] sm:%s677]
                %707 = vst [vmem:[%s687 + $0x48] sm:%s677] %v706
                %v708 = vld [vmem:[%s686 + $0x50] sm:%s677]
                %709 = vst [vmem:[%s687 + $0x50] sm:%s677] %v708
                %v710 = vld [vmem:[%s686 + $0x58] sm:%s677]
                %711 = vst [vmem:[%s687 + $0x58] sm:%s677] %v710
                %v712 = vld [vmem:[%s686 + $0x60] sm:%s677]
                %713 = vst [vmem:[%s687 + $0x60] sm:%s677] %v712
                %v714 = vld [vmem:[%s686 + $0x68] sm:%s677]
                %715 = vst [vmem:[%s687 + $0x68] sm:%s677] %v714
                %v716 = vld [vmem:[%s686 + $0x70] sm:%s677]
                %717 = vst [vmem:[%s687 + $0x70] sm:%s677] %v716
                %v718 = vld [vmem:[%s686 + $0x78] sm:%s677]
                %719 = vst [vmem:[%s687 + $0x78] sm:%s677] %v718
                %s720 = sadd.s32 1, %s685
                %p721 = scmp.ge.s32.totalorder %s720, %s678
                %s722 = scalar_select %p721, 0, %s720
                %s723 = smul.u32 %s722, 128
                %s724 = smul.u32 %s722, 128
                %s725 = scalar_lea.vmem %s657, %s723 [#allocation2]
                %s726 = scalar_lea.vmem %s668, %s724
              $region57: #{tpu_custom_call.1} parent=51 // loop_footer
                %s682 = sadd.s32 %s680, 1
              $region58: #{tpu_custom_call.1} parent=51 // loop_footer_branch
                %679 = sbr.rel target = $region54
              $region59: #{tpu_custom_call.1} parent=51 // loop_exit
                _
              %s727 = sshrl.u32 %s664, 4
              %s728 = sand.u32 %s664, 15
              %s729 = smul.u32 %s727, 16
              %s730 = smul.u32 8, %s729
              %s731 = scalar_lea.vmem %s657, %s730 [#allocation2]
              %s732 = smul.u32 8, %s729
              %s733 = scalar_lea.vmem %s668, %s732
              // While loop
              $region60: #{tpu_custom_call.1} parent=51 // loop_pre_header
                _
              $region61: #{tpu_custom_call.1} parent=51 // loop_header
                %s735 = sphi 0, %s737
                %p736 = scmp.ge.s32.totalorder %s735, %s728
                %s740 = sphi 0, %s747
                %s741 = sphi %s731, %s750
                %s742 = sphi %s733, %s751
              $region62: #{tpu_custom_call.1} parent=51 // loop_header_branch
                %739 = sbr.rel (%p736) target = $region66
              $region63: #{tpu_custom_call.1} parent=51 // loop_body
                %v743 = vld [vmem:[%s741] sm:%s677]
                %744 = vst [vmem:[%s742] sm:%s677] %v743
                %s745 = sadd.s32 1, %s740
                %p746 = scmp.ge.s32.totalorder %s745, %s728
                %s747 = scalar_select %p746, 0, %s745
                %s748 = smul.u32 %s747, 8
                %s749 = smul.u32 %s747, 8
                %s750 = scalar_lea.vmem %s731, %s748 [#allocation2]
                %s751 = scalar_lea.vmem %s733, %s749
              $region64: #{tpu_custom_call.1} parent=51 // loop_footer
                %s737 = sadd.s32 %s735, 1
              $region65: #{tpu_custom_call.1} parent=51 // loop_footer_branch
                %734 = sbr.rel target = $region61
              $region66: #{tpu_custom_call.1} parent=51 // loop_exit
                _
            $region52: #{tpu_custom_call.1} parent=43 // pred_fallthru
              _
          $region44: #{tpu_custom_call.1} parent=39 // pred_fallthru
            _
          %830 = vnop
        $region40: #{tpu_custom_call.1} parent=35 // pred_fallthru
          _
      $region36: #{tpu_custom_call.1} parent=5 // pred_fallthru
        _
      %p831 = scmp.le.s32.totalorder 2, %s10
      // Predicated region
      $region89: #{tpu_custom_call.1} parent=5 // pred_check
        %p832 = pneg %p831
      $region90: #{tpu_custom_call.1} parent=5 // pred_check_branch
        %834 = sbr.rel (%p832) target = $region92
      $region91: #{tpu_custom_call.1} parent=5 // pred_region
        %s835 = ssub.s32 %s10, 2
        // Predicated region
        $region93: #{tpu_custom_call.1} parent=91 // pred_check
          %p836 = pneg %p133
        $region94: #{tpu_custom_call.1} parent=91 // pred_check_branch
          %838 = sbr.rel (%p836) target = $region96
        $region95: #{tpu_custom_call.1} parent=91 // pred_region
          %s839 = sand.u32 %s118, 1
          %s840 = sand.u32 %s118, 1
          %s841 = smul.addr %s840, 128
          %s842 = scalar_lea.vmem [#allocation2], %s841
        $region96: #{tpu_custom_call.1} parent=91 // pred_fallthru
          _
      $region92: #{tpu_custom_call.1} parent=5 // pred_fallthru
        _
    $region6: #{tpu_custom_call.1} parent=1 // loop_footer
      %s14 = sadd.s32 1, %s10
    $region7: #{tpu_custom_call.1} parent=1 // loop_footer_branch
      %9 = sbr.rel target = $region3
    $region8: #{tpu_custom_call.1} parent=1 // loop_exit
      _

</llo_original>
